<compile_context>
chip_gen: v7x
topology: tpu7x:2x2x1
jax: 0.10.0
libtpu: 0.0.40
codegen_flags: <defaults>
</compile_context>

<pallas_src>
import functools

import jax
import jax.numpy as jnp
from jax.experimental import pallas as pl
from jax.experimental.pallas import tpu as pltpu

_LANE = 128
_BF16_SUBLANE = 16                 # one bf16 vreg packs [16, 128]
_VMEM_BUDGET = 40 << 20            # conservative working-set budget (v7x: 64 MiB / TC)
_VMEM_LIMIT_CAP = 56 << 20         # scoped-VMEM request cap, safe on every generation


def _round_up(x, m):
    return (x + m - 1) // m * m


def _default_epilogue_dtype():
    """bf16 epilogue on v6e/v7x (bf16 VPU/EUP); f32 on older chips / unknown."""
    try:
        kind = jax.devices()[0].device_kind.lower()
    except Exception:  # pragma: no cover
        return jnp.float32
    if any(f"v{n}" in kind for n in (2, 3, 4, 5)):
        return jnp.float32
    return jnp.bfloat16


def _vmem_footprint_bytes(tile_b, pdims, out_itemsize):
    """Conservative VMEM working-set estimate (weights counted double-buffered)."""
    num_layers = len(pdims) - 1
    act_in = 2 * tile_b * pdims[0] * 2                 # bf16 input tile, double-buffered
    act_out = 2 * tile_b * pdims[-1] * out_itemsize    # output tile, double-buffered
    weights = 2 * sum(pdims[i] * pdims[i + 1] * 2 for i in range(num_layers))
    biases = 2 * sum(8 * d * 4 for d in pdims[1:])     # (1, d) pads to 8 sublanes
    inter = sum(tile_b * d * 4 for d in pdims[1:])     # per-layer f32 matmul accumulators
    return act_in + act_out + weights + biases + inter


def _choose_tile_b(batch, block_batch, pdims, out_itemsize):
    """Batch-tile rows: multiple of 16, >=2 grid steps when possible, low padding
    waste, and a working set inside the (v7x-safe) VMEM budget."""
    target = _round_up(batch, _BF16_SUBLANE)
    tile = min(_round_up(max(block_batch, _BF16_SUBLANE), _BF16_SUBLANE), target)
    # Prefer >= 2 grid steps so dimension_semantics=("parallel",) can use both
    # v7x TensorCores (grid=(1,) would leave one TC idle).
    if target >= 2 * _BF16_SUBLANE:
        tile = min(tile, _round_up(pl.cdiv(target, 2), _BF16_SUBLANE))
    # Limit batch-padding waste to ~10% (or one sublane group).
    while tile > _BF16_SUBLANE and (
            _round_up(batch, tile) > max(int(1.1 * batch), batch + _BF16_SUBLANE)):
        tile = max(_BF16_SUBLANE, _round_up(tile // 2, _BF16_SUBLANE))
    # Shrink if the working set would blow the VMEM budget.
    while tile > _BF16_SUBLANE and (
            _vmem_footprint_bytes(tile, pdims, out_itemsize) > _VMEM_BUDGET):
        tile = max(_BF16_SUBLANE, _round_up(tile // 2, _BF16_SUBLANE))
    return tile


def _dnn_fused_kernel(*refs, num_layers, activation, epilogue_dtype):
    """Fused MLP tile: refs = (x_ref, w_0..w_{L-1}, b_0..b_{L-1}, o_ref)."""
    x_ref = refs[0]
    w_refs = refs[1:1 + num_layers]
    b_refs = refs[1 + num_layers:1 + 2 * num_layers]
    o_ref = refs[1 + 2 * num_layers]

    h = x_ref[...]                                   # (TILE_B, in_pad) bf16
    for i in range(num_layers):                      # static unroll: layer count fixed
        # bf16 x bf16 -> f32 accumulate on the MXU.
        y = jnp.dot(h, w_refs[i][...], preferred_element_type=jnp.float32)
        # Elementwise epilogue in bf16 (v6e/v7x) or f32 (v5e and older).
        y = y.astype(epilogue_dtype) + b_refs[i][...]
        if activation == "relu":
            y = jax.nn.relu(y)
        elif activation == "sigmoid":
            y = jax.nn.sigmoid(y)
        elif activation != "linear":
            raise ValueError(f"unsupported activation: {activation}")
        # TODO(synk): training-mode dropout (pltpu.prng_*) not implemented;
        # nn.Dropout is identity in eval mode.
        h = y.astype(jnp.bfloat16)                   # MXU-native input for next layer
    o_ref[...] = h.astype(o_ref.dtype)


def init_dnn_params(key, inputs_dim, hidden_units, init_std=1e-4):
    """Parameter init matching the PyTorch module's shapes.

    Weights ~ N(0, init_std) (the module's explicit re-init).
    Biases ~ U(-1/sqrt(fan_in), 1/sqrt(fan_in)) (PyTorch Linear default).
    Stored transposed ([in, out]) relative to nn.Linear's [out, in].
    """
    dims = [inputs_dim] + list(hidden_units)
    params = []
    for i in range(len(dims) - 1):
        key, kw, kb = jax.random.split(key, 3)
        fan_in, fan_out = dims[i], dims[i + 1]
        w = init_std * jax.random.normal(kw, (fan_in, fan_out), dtype=jnp.float32)
        bound = 1.0 / jnp.sqrt(jnp.float32(fan_in))
        b = jax.random.uniform(
            kb, (1, fan_out), dtype=jnp.float32, minval=-bound, maxval=bound)
        params.append((w, b))
    return params


def dnn_forward(x, params, activation="relu", dropout_rate=0.0, use_bn=False,
                block_batch=512, out_dtype=jnp.bfloat16):
    """Forward pass of DNN as a single fused Pallas kernel (inference mode)."""
    if use_bn:
        # TODO(synk): BatchNorm1d (use_bn=True) path not implemented.
        raise NotImplementedError("use_bn=True is not supported by this kernel")
    del dropout_rate  # nn.Dropout is identity at inference
    if len(params) == 0:
        raise ValueError("hidden_units is empty!!")

    batch, in_dim = x.shape
    num_layers = len(params)
    out_dim = params[-1][0].shape[1]
    epilogue_dtype = _default_epilogue_dtype()
    out_dtype = jnp.dtype(out_dtype)

    # ---- pad feature dims to 128 lanes. Zero padding is inert through the stack:
    #      with sigmoid the padded lanes become 0.5, but the next layer's padded
    #      weight ROWS are zero, so they contribute nothing; the final output is
    #      sliced back to the true width.
    dims = [in_dim] + [w.shape[1] for w, _ in params]
    pdims = [_round_up(d, _LANE) for d in dims]

    w_list, b_list = [], []
    for i, (w, b) in enumerate(params):
        wp = jnp.pad(w.astype(jnp.float32),
                     ((0, pdims[i] - dims[i]), (0, pdims[i + 1] - dims[i + 1])))
        bp = jnp.pad(b.reshape(1, -1).astype(jnp.float32),
                     ((0, 0), (0, pdims[i + 1] - dims[i + 1])))
        w_list.append(wp.astype(jnp.bfloat16))       # bf16 weights: MXU-native, half bytes
        b_list.append(bp.astype(epilogue_dtype))

    # ---- batch tiling: grid over batch; weights stay VMEM-resident.
    tile_b = _choose_tile_b(batch, block_batch, pdims, out_dtype.itemsize)
    pbatch = _round_up(batch, tile_b)
    grid = (pbatch // tile_b,)

    if pbatch == batch and pdims[0] == in_dim:
        xp = x.astype(jnp.bfloat16)                  # aligned: no extra HBM pad pass
    else:
        xp = jnp.pad(x.astype(jnp.bfloat16),
                     ((0, pbatch - batch), (0, pdims[0] - in_dim)))

    # ---- explicit VMEM budget (scoped default is only ~16-32 MiB).
    footprint = _vmem_footprint_bytes(tile_b, pdims, out_dtype.itemsize)
    vmem_limit = int(max(32 << 20,
                         min(int(1.3 * footprint) + (2 << 20), _VMEM_LIMIT_CAP)))

    # ---- advisory cost estimate for the XLA scheduler.
    flops = 2 * pbatch * sum(pdims[i] * pdims[i + 1] for i in range(num_layers))
    transcendentals = (pbatch * sum(pdims[1:])) if activation == "sigmoid" else 0
    bytes_accessed = (
        xp.size * 2
        + pbatch * pdims[-1] * out_dtype.itemsize
        + sum(v.size * v.dtype.itemsize for v in w_list)
        + sum(v.size * v.dtype.itemsize for v in b_list))

    kernel = functools.partial(_dnn_fused_kernel, num_layers=num_layers,
                               activation=activation, epilogue_dtype=epilogue_dtype)

    def _run(single_buffer_consts):
        # Weights/biases have constant index_maps -> request single buffering so
        # they are not double-buffered (halves weight-resident VMEM; matters most
        # on v7x's 64 MiB per-TC VMEM).
        const_kwargs = (dict(pipeline_mode=pl.Buffered(1))
                        if single_buffer_consts else {})
        in_specs = [pl.BlockSpec((tile_b, pdims[0]), lambda i: (i, 0))]
        for li in range(num_layers):
            in_specs.append(pl.BlockSpec((pdims[li], pdims[li + 1]),
                                         lambda i: (0, 0), **const_kwargs))
        for li in range(num_layers):
            in_specs.append(pl.BlockSpec((1, pdims[li + 1]),
                                         lambda i: (0, 0), **const_kwargs))
        out_specs = pl.BlockSpec((tile_b, pdims[-1]), lambda i: (i, 0))
        return pl.pallas_call(
            kernel,
            out_shape=jax.ShapeDtypeStruct((pbatch, pdims[-1]), out_dtype),
            grid_spec=pltpu.PrefetchScalarGridSpec(
                num_scalar_prefetch=0,
                grid=grid,
                in_specs=in_specs,
                out_specs=out_specs,
            ),
            compiler_params=pltpu.CompilerParams(
                dimension_semantics=("parallel",),
                vmem_limit_bytes=vmem_limit),
            cost_estimate=pl.CostEstimate(
                flops=flops,
                transcendentals=transcendentals,
                bytes_accessed=bytes_accessed),
        )(xp, *w_list, *b_list)

    try:
        out_padded = _run(True)
    except Exception:  # pragma: no cover - JAX builds that reject Buffered(1) here
        out_padded = _run(False)

    if pbatch == batch and pdims[-1] == out_dim:
        return out_padded                            # aligned: skip the slice pass
    return out_padded[:batch, :out_dim]


if __name__ == "__main__":
    key = jax.random.PRNGKey(0)
    inputs_dim = 32
    hidden_units = (64, 32, 16)

    k_x1, k_x2, k_p = jax.random.split(key, 3)
    params = init_dnn_params(k_p, inputs_dim, hidden_units)

    def ref_forward(x, act):
        h = x
        for w, b in params:
            y = h @ w + b
            if act == "relu":
                y = jnp.maximum(y, 0.0)
            elif act == "sigmoid":
                y = jax.nn.sigmoid(y)
            h = y
        return h

    # Case 1: small batch (single tile, grid=(1,)), relu.
    x1 = jax.random.normal(k_x1, (8, inputs_dim), dtype=jnp.float32)
    out1 = jax.block_until_ready(dnn_forward(x1, params, activation="relu"))
    ref1 = ref_forward(x1, "relu")
    assert out1.shape == (8, hidden_units[-1])
    err1 = float(jnp.max(jnp.abs(out1.astype(jnp.float32) - ref1)))
    assert jnp.allclose(out1.astype(jnp.float32), ref1, atol=1e-2, rtol=2e-2), err1

    # Case 2: multi-tile batch with a zero-padded last tile (grid > 1), sigmoid.
    x2 = jax.random.normal(k_x2, (40, inputs_dim), dtype=jnp.float32)
    out2 = jax.block_until_ready(dnn_forward(x2, params, activation="sigmoid"))
    ref2 = ref_forward(x2, "sigmoid")
    assert out2.shape == (40, hidden_units[-1])
    err2 = float(jnp.max(jnp.abs(out2.astype(jnp.float32) - ref2)))
    assert jnp.allclose(out2.astype(jnp.float32), ref2, atol=1e-2, rtol=2e-2), err2

    print("KERNEL_OK")
</pallas_src>

<mosaic_0001>
module attributes {stable_mosaic.version = 11 : i64} {
  func.func @_dnn_fused_kernel(%arg0: i32, %arg1: memref<16x128xbf16, #tpu.memory_space<vmem>>, %arg2: memref<128x128xbf16, #tpu.memory_space<vmem>>, %arg3: memref<128x128xbf16, #tpu.memory_space<vmem>>, %arg4: memref<128x128xbf16, #tpu.memory_space<vmem>>, %arg5: memref<1x128xbf16, #tpu.memory_space<vmem>>, %arg6: memref<1x128xbf16, #tpu.memory_space<vmem>>, %arg7: memref<1x128xbf16, #tpu.memory_space<vmem>>, %arg8: memref<16x128xbf16, #tpu.memory_space<vmem>>) attributes {dimension_semantics = [#tpu.dimension_semantics<parallel>], iteration_bounds = array<i64: 1>, scalar_prefetch = 0 : i64, scratch_operands = 0 : i64, tpu.core_type = #tpu.core_type<tc>, window_params = [{transform_indices = @transform_0, window_bounds = array<i64: 16, 128>}, {pipeline_mode = #tpu.pipeline_mode<synchronous>, transform_indices = @transform_1, window_bounds = array<i64: 128, 128>}, {pipeline_mode = #tpu.pipeline_mode<synchronous>, transform_indices = @transform_2, window_bounds = array<i64: 128, 128>}, {pipeline_mode = #tpu.pipeline_mode<synchronous>, transform_indices = @transform_3, window_bounds = array<i64: 128, 128>}, {pipeline_mode = #tpu.pipeline_mode<synchronous>, transform_indices = @transform_4, window_bounds = array<i64: 1, 128>}, {pipeline_mode = #tpu.pipeline_mode<synchronous>, transform_indices = @transform_5, window_bounds = array<i64: 1, 128>}, {pipeline_mode = #tpu.pipeline_mode<synchronous>, transform_indices = @transform_6, window_bounds = array<i64: 1, 128>}, {transform_indices = @transform_7, window_bounds = array<i64: 16, 128>}]} {
    %c0 = arith.constant 0 : index
    %c0_0 = arith.constant 0 : index
    %0 = vector.load %arg1[%c0, %c0_0] : memref<16x128xbf16, #tpu.memory_space<vmem>>, vector<16x128xbf16>
    %c0_1 = arith.constant 0 : index
    %c0_2 = arith.constant 0 : index
    %1 = vector.load %arg2[%c0_1, %c0_2] : memref<128x128xbf16, #tpu.memory_space<vmem>>, vector<128x128xbf16>
    %cst = arith.constant dense<0.000000e+00> : vector<16x128xf32>
    %2 = tpu.matmul %0, %1, %cst {dimension_numbers = #tpu.dot_dimension_numbers<[1], [0], [0], [1], [0, 0, 1, 1], [], []>} : vector<16x128xbf16>, vector<128x128xbf16>, vector<16x128xf32> -> vector<16x128xf32>
    %3 = arith.truncf %2 : vector<16x128xf32> to vector<16x128xbf16>
    %c0_3 = arith.constant 0 : index
    %c0_4 = arith.constant 0 : index
    %4 = vector.load %arg5[%c0_3, %c0_4] : memref<1x128xbf16, #tpu.memory_space<vmem>>, vector<1x128xbf16>
    %5 = vector.broadcast %4 : vector<1x128xbf16> to vector<16x128xbf16>
    %6 = arith.addf %3, %5 : vector<16x128xbf16>
    %cst_5 = arith.constant 0.000000e+00 : bf16
    %7 = vector.broadcast %cst_5 : bf16 to vector<16x128xbf16>
    %8 = arith.maximumf %6, %7 : vector<16x128xbf16>
    %c0_6 = arith.constant 0 : index
    %c0_7 = arith.constant 0 : index
    %9 = vector.load %arg3[%c0_6, %c0_7] : memref<128x128xbf16, #tpu.memory_space<vmem>>, vector<128x128xbf16>
    %cst_8 = arith.constant dense<0.000000e+00> : vector<16x128xf32>
    %10 = tpu.matmul %8, %9, %cst_8 {dimension_numbers = #tpu.dot_dimension_numbers<[1], [0], [0], [1], [0, 0, 1, 1], [], []>} : vector<16x128xbf16>, vector<128x128xbf16>, vector<16x128xf32> -> vector<16x128xf32>
    %11 = arith.truncf %10 : vector<16x128xf32> to vector<16x128xbf16>
    %c0_9 = arith.constant 0 : index
    %c0_10 = arith.constant 0 : index
    %12 = vector.load %arg6[%c0_9, %c0_10] : memref<1x128xbf16, #tpu.memory_space<vmem>>, vector<1x128xbf16>
    %13 = vector.broadcast %12 : vector<1x128xbf16> to vector<16x128xbf16>
    %14 = arith.addf %11, %13 : vector<16x128xbf16>
    %cst_11 = arith.constant 0.000000e+00 : bf16
    %15 = vector.broadcast %cst_11 : bf16 to vector<16x128xbf16>
    %16 = arith.maximumf %14, %15 : vector<16x128xbf16>
    %c0_12 = arith.constant 0 : index
    %c0_13 = arith.constant 0 : index
    %17 = vector.load %arg4[%c0_12, %c0_13] : memref<128x128xbf16, #tpu.memory_space<vmem>>, vector<128x128xbf16>
    %cst_14 = arith.constant dense<0.000000e+00> : vector<16x128xf32>
    %18 = tpu.matmul %16, %17, %cst_14 {dimension_numbers = #tpu.dot_dimension_numbers<[1], [0], [0], [1], [0, 0, 1, 1], [], []>} : vector<16x128xbf16>, vector<128x128xbf16>, vector<16x128xf32> -> vector<16x128xf32>
    %19 = arith.truncf %18 : vector<16x128xf32> to vector<16x128xbf16>
    %c0_15 = arith.constant 0 : index
    %c0_16 = arith.constant 0 : index
    %20 = vector.load %arg7[%c0_15, %c0_16] : memref<1x128xbf16, #tpu.memory_space<vmem>>, vector<1x128xbf16>
    %21 = vector.broadcast %20 : vector<1x128xbf16> to vector<16x128xbf16>
    %22 = arith.addf %19, %21 : vector<16x128xbf16>
    %cst_17 = arith.constant 0.000000e+00 : bf16
    %23 = vector.broadcast %cst_17 : bf16 to vector<16x128xbf16>
    %24 = arith.maximumf %22, %23 : vector<16x128xbf16>
    %c0_18 = arith.constant 0 : index
    %c0_19 = arith.constant 0 : index
    %25 = vector.load %arg8[%c0_18, %c0_19] : memref<16x128xbf16, #tpu.memory_space<vmem>>, vector<16x128xbf16>
    tpu.vector_store %arg8[%c0_18, %c0_19], %24 {strides = array<i32>} : memref<16x128xbf16, #tpu.memory_space<vmem>>, vector<16x128xbf16>,
    return
  }
  func.func @transform_0(%arg0: i32) -> (i32, i32) {
    %c0_i32 = arith.constant 0 : i32
    %c0_i32_0 = arith.constant 0 : i32
    return %arg0, %c0_i32 : i32, i32
  }
  func.func @transform_1(%arg0: i32) -> (i32, i32) {
    %c0_i32 = arith.constant 0 : i32
    %c0_i32_0 = arith.constant 0 : i32
    %c0_i32_1 = arith.constant 0 : i32
    return %c0_i32, %c0_i32_0 : i32, i32
  }
  func.func @transform_2(%arg0: i32) -> (i32, i32) {
    %c0_i32 = arith.constant 0 : i32
    %c0_i32_0 = arith.constant 0 : i32
    %c0_i32_1 = arith.constant 0 : i32
    return %c0_i32, %c0_i32_0 : i32, i32
  }
  func.func @transform_3(%arg0: i32) -> (i32, i32) {
    %c0_i32 = arith.constant 0 : i32
    %c0_i32_0 = arith.constant 0 : i32
    %c0_i32_1 = arith.constant 0 : i32
    return %c0_i32, %c0_i32_0 : i32, i32
  }
  func.func @transform_4(%arg0: i32) -> (i32, i32) {
    %c0_i32 = arith.constant 0 : i32
    %c0_i32_0 = arith.constant 0 : i32
    %c0_i32_1 = arith.constant 0 : i32
    return %c0_i32, %c0_i32_0 : i32, i32
  }
  func.func @transform_5(%arg0: i32) -> (i32, i32) {
    %c0_i32 = arith.constant 0 : i32
    %c0_i32_0 = arith.constant 0 : i32
    %c0_i32_1 = arith.constant 0 : i32
    return %c0_i32, %c0_i32_0 : i32, i32
  }
  func.func @transform_6(%arg0: i32) -> (i32, i32) {
    %c0_i32 = arith.constant 0 : i32
    %c0_i32_0 = arith.constant 0 : i32
    %c0_i32_1 = arith.constant 0 : i32
    return %c0_i32, %c0_i32_0 : i32, i32
  }
  func.func @transform_7(%arg0: i32) -> (i32, i32) {
    %c0_i32 = arith.constant 0 : i32
    %c0_i32_0 = arith.constant 0 : i32
    return %arg0, %c0_i32 : i32, i32
  }
}

module attributes {stable_mosaic.version = 11 : i64} {
  func.func @_dnn_fused_kernel(%arg0: i32, %arg1: memref<16x128xbf16, #tpu.memory_space<vmem>>, %arg2: memref<128x128xbf16, #tpu.memory_space<vmem>>, %arg3: memref<128x128xbf16, #tpu.memory_space<vmem>>, %arg4: memref<128x128xbf16, #tpu.memory_space<vmem>>, %arg5: memref<1x128xbf16, #tpu.memory_space<vmem>>, %arg6: memref<1x128xbf16, #tpu.memory_space<vmem>>, %arg7: memref<1x128xbf16, #tpu.memory_space<vmem>>, %arg8: memref<16x128xbf16, #tpu.memory_space<vmem>>) attributes {dimension_semantics = [#tpu.dimension_semantics<parallel>], iteration_bounds = array<i64: 1>, scalar_prefetch = 0 : i64, scratch_operands = 0 : i64, tpu.core_type = #tpu.core_type<tc>, window_params = [{transform_indices = @transform_0, window_bounds = array<i64: 16, 128>}, {pipeline_mode = #tpu.pipeline_mode<synchronous>, transform_indices = @transform_1, window_bounds = array<i64: 128, 128>}, {pipeline_mode = #tpu.pipeline_mode<synchronous>, transform_indices = @transform_2, window_bounds = array<i64: 128, 128>}, {pipeline_mode = #tpu.pipeline_mode<synchronous>, transform_indices = @transform_3, window_bounds = array<i64: 128, 128>}, {pipeline_mode = #tpu.pipeline_mode<synchronous>, transform_indices = @transform_4, window_bounds = array<i64: 1, 128>}, {pipeline_mode = #tpu.pipeline_mode<synchronous>, transform_indices = @transform_5, window_bounds = array<i64: 1, 128>}, {pipeline_mode = #tpu.pipeline_mode<synchronous>, transform_indices = @transform_6, window_bounds = array<i64: 1, 128>}, {transform_indices = @transform_7, window_bounds = array<i64: 16, 128>}]} {
    %c0 = arith.constant 0 : index
    %c0_0 = arith.constant 0 : index
    %0 = vector.load %arg1[%c0, %c0_0] : memref<16x128xbf16, #tpu.memory_space<vmem>>, vector<16x128xbf16>
    %c0_1 = arith.constant 0 : index
    %c0_2 = arith.constant 0 : index
    %1 = vector.load %arg2[%c0_1, %c0_2] : memref<128x128xbf16, #tpu.memory_space<vmem>>, vector<128x128xbf16>
    %cst = arith.constant dense<0.000000e+00> : vector<16x128xf32>
    %2 = tpu.matmul %0, %1, %cst {dimension_numbers = #tpu.dot_dimension_numbers<[1], [0], [0], [1], [0, 0, 1, 1], [], []>} : vector<16x128xbf16>, vector<128x128xbf16>, vector<16x128xf32> -> vector<16x128xf32>
    %3 = arith.truncf %2 : vector<16x128xf32> to vector<16x128xbf16>
    %c0_3 = arith.constant 0 : index
    %c0_4 = arith.constant 0 : index
    %4 = vector.load %arg5[%c0_3, %c0_4] : memref<1x128xbf16, #tpu.memory_space<vmem>>, vector<1x128xbf16>
    %5 = vector.broadcast %4 : vector<1x128xbf16> to vector<16x128xbf16>
    %6 = arith.addf %3, %5 : vector<16x128xbf16>
    %cst_5 = arith.constant 0.000000e+00 : bf16
    %7 = vector.broadcast %cst_5 : bf16 to vector<16x128xbf16>
    %8 = arith.maximumf %6, %7 : vector<16x128xbf16>
    %c0_6 = arith.constant 0 : index
    %c0_7 = arith.constant 0 : index
    %9 = vector.load %arg3[%c0_6, %c0_7] : memref<128x128xbf16, #tpu.memory_space<vmem>>, vector<128x128xbf16>
    %cst_8 = arith.constant dense<0.000000e+00> : vector<16x128xf32>
    %10 = tpu.matmul %8, %9, %cst_8 {dimension_numbers = #tpu.dot_dimension_numbers<[1], [0], [0], [1], [0, 0, 1, 1], [], []>} : vector<16x128xbf16>, vector<128x128xbf16>, vector<16x128xf32> -> vector<16x128xf32>
    %11 = arith.truncf %10 : vector<16x128xf32> to vector<16x128xbf16>
    %c0_9 = arith.constant 0 : index
    %c0_10 = arith.constant 0 : index
    %12 = vector.load %arg6[%c0_9, %c0_10] : memref<1x128xbf16, #tpu.memory_space<vmem>>, vector<1x128xbf16>
    %13 = vector.broadcast %12 : vector<1x128xbf16> to vector<16x128xbf16>
    %14 = arith.addf %11, %13 : vector<16x128xbf16>
    %cst_11 = arith.constant 0.000000e+00 : bf16
    %15 = vector.broadcast %cst_11 : bf16 to vector<16x128xbf16>
    %16 = arith.maximumf %14, %15 : vector<16x128xbf16>
    %c0_12 = arith.constant 0 : index
    %c0_13 = arith.constant 0 : index
    %17 = vector.load %arg4[%c0_12, %c0_13] : memref<128x128xbf16, #tpu.memory_space<vmem>>, vector<128x128xbf16>
    %cst_14 = arith.constant dense<0.000000e+00> : vector<16x128xf32>
    %18 = tpu.matmul %16, %17, %cst_14 {dimension_numbers = #tpu.dot_dimension_numbers<[1], [0], [0], [1], [0, 0, 1, 1], [], []>} : vector<16x128xbf16>, vector<128x128xbf16>, vector<16x128xf32> -> vector<16x128xf32>
    %19 = arith.truncf %18 : vector<16x128xf32> to vector<16x128xbf16>
    %c0_15 = arith.constant 0 : index
    %c0_16 = arith.constant 0 : index
    %20 = vector.load %arg7[%c0_15, %c0_16] : memref<1x128xbf16, #tpu.memory_space<vmem>>, vector<1x128xbf16>
    %21 = vector.broadcast %20 : vector<1x128xbf16> to vector<16x128xbf16>
    %22 = arith.addf %19, %21 : vector<16x128xbf16>
    %cst_17 = arith.constant 0.000000e+00 : bf16
    %23 = vector.broadcast %cst_17 : bf16 to vector<16x128xbf16>
    %24 = arith.maximumf %22, %23 : vector<16x128xbf16>
    %c0_18 = arith.constant 0 : index
    %c0_19 = arith.constant 0 : index
    %25 = vector.load %arg8[%c0_18, %c0_19] : memref<16x128xbf16, #tpu.memory_space<vmem>>, vector<16x128xbf16>
    tpu.vector_store %arg8[%c0_18, %c0_19], %24 {strides = array<i32>} : memref<16x128xbf16, #tpu.memory_space<vmem>>, vector<16x128xbf16>,
    return
  }
  func.func @transform_0(%arg0: i32) -> (i32, i32) {
    %c0_i32 = arith.constant 0 : i32
    %c0_i32_0 = arith.constant 0 : i32
    return %arg0, %c0_i32 : i32, i32
  }
  func.func @transform_1(%arg0: i32) -> (i32, i32) {
    %c0_i32 = arith.constant 0 : i32
    %c0_i32_0 = arith.constant 0 : i32
    %c0_i32_1 = arith.constant 0 : i32
    return %c0_i32, %c0_i32_0 : i32, i32
  }
  func.func @transform_2(%arg0: i32) -> (i32, i32) {
    %c0_i32 = arith.constant 0 : i32
    %c0_i32_0 = arith.constant 0 : i32
    %c0_i32_1 = arith.constant 0 : i32
    return %c0_i32, %c0_i32_0 : i32, i32
  }
  func.func @transform_3(%arg0: i32) -> (i32, i32) {
    %c0_i32 = arith.constant 0 : i32
    %c0_i32_0 = arith.constant 0 : i32
    %c0_i32_1 = arith.constant 0 : i32
    return %c0_i32, %c0_i32_0 : i32, i32
  }
  func.func @transform_4(%arg0: i32) -> (i32, i32) {
    %c0_i32 = arith.constant 0 : i32
    %c0_i32_0 = arith.constant 0 : i32
    %c0_i32_1 = arith.constant 0 : i32
    return %c0_i32, %c0_i32_0 : i32, i32
  }
  func.func @transform_5(%arg0: i32) -> (i32, i32) {
    %c0_i32 = arith.constant 0 : i32
    %c0_i32_0 = arith.constant 0 : i32
    %c0_i32_1 = arith.constant 0 : i32
    return %c0_i32, %c0_i32_0 : i32, i32
  }
  func.func @transform_6(%arg0: i32) -> (i32, i32) {
    %c0_i32 = arith.constant 0 : i32
    %c0_i32_0 = arith.constant 0 : i32
    %c0_i32_1 = arith.constant 0 : i32
    return %c0_i32, %c0_i32_0 : i32, i32
  }
  func.func @transform_7(%arg0: i32) -> (i32, i32) {
    %c0_i32 = arith.constant 0 : i32
    %c0_i32_0 = arith.constant 0 : i32
    return %arg0, %c0_i32 : i32, i32
  }
}

</mosaic_0001>

<llo_original>
// kernel: tpu_custom_call.1
$region0: #{tpu_custom_call.1}
  #allocation0 [shape = 'u32[]', space=smem, size = 0x4, offset = 0x4, fixed_abs, tag = 'smem constant byte address 0x4 - core index']
  #allocation1 [shape = 'u32[144,128]{1,0:T(1,128)}', space=vmem, size = 0x12000, scoped, tag = 'internal scratch']
  %s0 = inlined_call_operand.hbm [shape: bf16[16,128], index: 0, kind: input, shape index: {}]
  %s1 = inlined_call_operand.hbm [shape: bf16[128,128], index: 1, kind: input, shape index: {}]
  %s2 = inlined_call_operand.hbm [shape: bf16[128,128], index: 2, kind: input, shape index: {}]
  %s3 = inlined_call_operand.hbm [shape: bf16[128,128], index: 3, kind: input, shape index: {}]
  %s4 = inlined_call_operand.vmem [shape: bf16[1,128], index: 4, kind: input, shape index: {}]
  %s5 = inlined_call_operand.vmem [shape: bf16[1,128], index: 5, kind: input, shape index: {}]
  %s6 = inlined_call_operand.vmem [shape: bf16[1,128], index: 6, kind: input, shape index: {}]
  %s7 = inlined_call_operand.hbm [shape: bf16[16,128], index: 7, kind: output, shape index: {}]
  %s8 = sld [smem:[#allocation0]]
  $region54: #{tpu_custom_call.1} parent=0
    _
  %s10 = ssub.s32 1, %s8
  %s11 = scalar_select 0, %s10, %s8
  $region1: #{tpu_custom_call.1} parent=0
    #allocation2 [shape = 'u8[4096]{0}', space=vmem, size = 0x1000, scoped, tag = 'input window, operand 0, single buffered']
    #allocation3 [shape = 's32[1]{0}', space=sflag, size = 0x4, scoped, tag = 'scoped memory for tpu_custom_call.1']
    #allocation4 [shape = 's32[1]{0}', space=sflag, size = 0x4, scoped, tag = 'scoped memory for tpu_custom_call.1']
    #allocation5 [shape = 'u8[32768]{0}', space=vmem, size = 0x8000, scoped, tag = 'input window, operand 1, single buffered']
    #allocation6 [shape = 's32[1]{0}', space=sflag, size = 0x4, scoped, tag = 'scoped memory for tpu_custom_call.1']
    #allocation7 [shape = 'u8[32768]{0}', space=vmem, size = 0x8000, scoped, tag = 'input window, operand 2, single buffered']
    #allocation8 [shape = 'u8[32768]{0}', space=vmem, size = 0x8000, scoped, tag = 'input window, operand 3, single buffered']
    #allocation9 [shape = 's32[1]{0}', space=sflag, size = 0x4, scoped, tag = 'scoped memory for tpu_custom_call.1']
    #allocation10 [shape = 'u8[4096]{0}', space=vmem, size = 0x1000, scoped, tag = 'output window, operand 0, single buffered']
    %12 = vsyncpa [#allocation3], 0
    %13 = vsyncpa [#allocation6], 0
    %14 = vsyncpa [#allocation9], 0
    %15 = vsyncpa [#allocation4], 0
    // Predicated region
    $region2: #{tpu_custom_call.1} parent=1 // pred_check
      _
    $region3: #{tpu_custom_call.1} parent=1 // pred_check_branch
      %17 = sbr.rel (0) target = $region5
    $region4: #{tpu_custom_call.1} parent=1 // pred_region
      %s19 = ssub.s32 128, 128
      %20 = vsyncadd [#allocation3], %s19
      %s21 = sshll.u32 [#allocation2], 4
      %s22 = int_to_ptr.vmem [resolvable:$true] %s21
      %27 = dma.hbm_to_vmem [thread:$0]  %s0, 128, %s22, [#allocation3], 64, 64, 4
    $region5: #{tpu_custom_call.1} parent=1 // pred_fallthru
      _
    // Predicated region
    $region6: #{tpu_custom_call.1} parent=1 // pred_check
      _
    $region7: #{tpu_custom_call.1} parent=1 // pred_check_branch
      %29 = sbr.rel (0) target = $region9
    $region8: #{tpu_custom_call.1} parent=1 // pred_region
      %s31 = ssub.s32 1024, 1024
      %32 = vsyncadd [#allocation6], %s31
      %s33 = sshll.u32 [#allocation5], 4
      %s34 = int_to_ptr.vmem [resolvable:$true] %s33
      %39 = dma.hbm_to_vmem [thread:$0]  %s1, 1024, %s34, [#allocation6], 64, 64, 4
    $region9: #{tpu_custom_call.1} parent=1 // pred_fallthru
      _
    // Predicated region
    $region10: #{tpu_custom_call.1} parent=1 // pred_check
      _
    $region11: #{tpu_custom_call.1} parent=1 // pred_check_branch
      %41 = sbr.rel (0) target = $region13
    $region12: #{tpu_custom_call.1} parent=1 // pred_region
      %s43 = ssub.s32 1024, 1024
      %44 = vsyncadd [#allocation6], %s43
      %s45 = sshll.u32 [#allocation7], 4
      %s46 = int_to_ptr.vmem [resolvable:$true] %s45
      %51 = dma.hbm_to_vmem [thread:$0]  %s2, 1024, %s46, [#allocation6], 64, 64, 4
    $region13: #{tpu_custom_call.1} parent=1 // pred_fallthru
      _
    // Predicated region
    $region14: #{tpu_custom_call.1} parent=1 // pred_check
      _
    $region15: #{tpu_custom_call.1} parent=1 // pred_check_branch
      %53 = sbr.rel (0) target = $region17
    $region16: #{tpu_custom_call.1} parent=1 // pred_region
      %s55 = ssub.s32 1024, 1024
      %56 = vsyncadd [#allocation9], %s55
      %s57 = sshll.u32 [#allocation8], 4
      %s58 = int_to_ptr.vmem [resolvable:$true] %s57
      %63 = dma.hbm_to_vmem [thread:$0]  %s3, 1024, %s58, [#allocation9], 64, 64, 4
    $region17: #{tpu_custom_call.1} parent=1 // pred_fallthru
      _
    // Predicated region
    $region18: #{tpu_custom_call.1} parent=1 // pred_check
      _
    $region19: #{tpu_custom_call.1} parent=1 // pred_check_branch
      %65 = sbr.rel (0) target = $region21
    $region20: #{tpu_custom_call.1} parent=1 // pred_region
      _
    $region21: #{tpu_custom_call.1} parent=1 // pred_fallthru
      _
    // Predicated region
    $region22: #{tpu_custom_call.1} parent=1 // pred_check
      _
    $region23: #{tpu_custom_call.1} parent=1 // pred_check_branch
      %67 = sbr.rel (0) target = $region25
    $region24: #{tpu_custom_call.1} parent=1 // pred_region
      _
    $region25: #{tpu_custom_call.1} parent=1 // pred_fallthru
      _
    // Predicated region
    $region26: #{tpu_custom_call.1} parent=1 // pred_check
      _
    $region27: #{tpu_custom_call.1} parent=1 // pred_check_branch
      %69 = sbr.rel (0) target = $region29
    $region28: #{tpu_custom_call.1} parent=1 // pred_region
      _
    $region29: #{tpu_custom_call.1} parent=1 // pred_fallthru
      _
    // Predicated region
    $region30: #{tpu_custom_call.1} parent=1 // pred_check
      _
    $region31: #{tpu_custom_call.1} parent=1 // pred_check_branch
      %71 = sbr.rel (0) target = $region33
    $region32: #{tpu_custom_call.1} parent=1 // pred_region
      %72 = dma.done [#allocation3], 128
    $region33: #{tpu_custom_call.1} parent=1 // pred_fallthru
      _
    // Predicated region
    $region34: #{tpu_custom_call.1} parent=1 // pred_check
      _
    $region35: #{tpu_custom_call.1} parent=1 // pred_check_branch
      %74 = sbr.rel (0) target = $region37
    $region36: #{tpu_custom_call.1} parent=1 // pred_region
      %75 = dma.done [#allocation6], 1024
    $region37: #{tpu_custom_call.1} parent=1 // pred_fallthru
      _
    // Predicated region
    $region38: #{tpu_custom_call.1} parent=1 // pred_check
      _
    $region39: #{tpu_custom_call.1} parent=1 // pred_check_branch
      %77 = sbr.rel (0) target = $region41
    $region40: #{tpu_custom_call.1} parent=1 // pred_region
      %78 = dma.done [#allocation6], 1024
    $region41: #{tpu_custom_call.1} parent=1 // pred_fallthru
      _
    // Predicated region
    $region42: #{tpu_custom_call.1} parent=1 // pred_check
      _
    $region43: #{tpu_custom_call.1} parent=1 // pred_check_branch
      %80 = sbr.rel (0) target = $region45
    $region44: #{tpu_custom_call.1} parent=1 // pred_region
      %81 = dma.done [#allocation9], 1024
    $region45: #{tpu_custom_call.1} parent=1 // pred_fallthru
      _
    %v83 = vld [vmem:[#allocation2] sm:$0xf]
    %v84 = vld [vmem:[#allocation2 + $0x4] sm:$0xf]
    %v85 = vld [vmem:[#allocation5] sm:$0xf]
    %v86 = vld [vmem:[#allocation5 + $0x4] sm:$0xf]
    %v87 = vld [vmem:[#allocation5 + $0x8] sm:$0xf]
    %v88 = vld [vmem:[#allocation5 + $0xc] sm:$0xf]
    %v89 = vld [vmem:[#allocation5 + $0x10] sm:$0xf]
    %v90 = vld [vmem:[#allocation5 + $0x14] sm:$0xf]
    %v91 = vld [vmem:[#allocation5 + $0x18] sm:$0xf]
    %v92 = vld [vmem:[#allocation5 + $0x1c] sm:$0xf]
    %v93 = vld [vmem:[#allocation5 + $0x20] sm:$0xf]
    %v94 = vld [vmem:[#allocation5 + $0x24] sm:$0xf]
    %v95 = vld [vmem:[#allocation5 + $0x28] sm:$0xf]
    %v96 = vld [vmem:[#allocation5 + $0x2c] sm:$0xf]
    %v97 = vld [vmem:[#allocation5 + $0x30] sm:$0xf]
    %v98 = vld [vmem:[#allocation5 + $0x34] sm:$0xf]
    %v99 = vld [vmem:[#allocation5 + $0x38] sm:$0xf]
    %v100 = vld [vmem:[#allocation5 + $0x3c] sm:$0xf]
    %v103 = vunpack.c.l.b16 %v83
    %v104 = vunpack.c.l.b16 %v84
    %v105 = vpack.c.b16 %v104, %v103
    %v123 = vunpack.c.l.b16 %v85
    %v124 = vunpack.c.l.b16 %v86
    %v125 = vunpack.c.l.b16 %v87
    %v126 = vunpack.c.l.b16 %v88
    %v127 = vunpack.c.l.b16 %v89
    %v128 = vunpack.c.l.b16 %v90
    %v129 = vunpack.c.l.b16 %v91
    %v130 = vunpack.c.l.b16 %v92
    %v131 = vunpack.c.l.b16 %v93
    %v132 = vunpack.c.l.b16 %v94
    %v133 = vunpack.c.l.b16 %v95
    %v134 = vunpack.c.l.b16 %v96
    %v135 = vunpack.c.l.b16 %v97
    %v136 = vunpack.c.l.b16 %v98
    %v137 = vunpack.c.l.b16 %v99
    %v138 = vunpack.c.l.b16 %v100
    %v139 = vpack.c.b16 %v124, %v123
    %v140 = vpack.c.b16 %v126, %v125
    %v141 = vpack.c.b16 %v128, %v127
    %v142 = vpack.c.b16 %v130, %v129
    %v143 = vpack.c.b16 %v132, %v131
    %v144 = vpack.c.b16 %v134, %v133
    %v145 = vpack.c.b16 %v136, %v135
    %v146 = vpack.c.b16 %v138, %v137
    %155 = vmatprep.subr.bf16.mxu0 0
    %156 = vmatpush1.bf16.msra.mxu0 %v139
    %157 = vmatprep.subr.bf16.mxu0 0
    %158 = vmatpush1.bf16.msra.mxu0 %v140
    %159 = vmatprep.subr.bf16.mxu0 0
    %160 = vmatpush1.bf16.msra.mxu0 %v141
    %161 = vmatprep.subr.bf16.mxu0 0
    %162 = vmatpush1.bf16.msra.mxu0 %v142
    %163 = vmatprep.subr.bf16.mxu0 0
    %164 = vmatpush1.bf16.msra.mxu0 %v143
    %165 = vmatprep.subr.bf16.mxu0 0
    %166 = vmatpush1.bf16.msra.mxu0 %v144
    %167 = vmatprep.subr.bf16.mxu0 0
    %168 = vmatpush1.bf16.msra.mxu0 %v145
    %169 = vmatprep.subr.bf16.mxu0 0
    %170 = vmatpush1.bf16.msra.mxu0 %v146
    %171 = vmatprep.subr.bf16.mxu0 0
    %172 = vmatpush1.bf16.msra.mxu0 0
    %173 = vmatprep.subr.bf16.mxu0 0
    %174 = vmatpush1.bf16.msra.mxu0 0
    %175 = vmatprep.subr.bf16.mxu0 0
    %176 = vmatpush1.bf16.msra.mxu0 0
    %177 = vmatprep.subr.bf16.mxu0 0
    %178 = vmatpush1.bf16.msra.mxu0 0
    %179 = vmatprep.subr.bf16.mxu0 0
    %180 = vmatpush1.bf16.msra.mxu0 0
    %181 = vmatprep.subr.bf16.mxu0 0
    %182 = vmatpush1.bf16.msra.mxu0 0
    %183 = vmatprep.subr.bf16.mxu0 0
    %184 = vmatpush1.bf16.msra.mxu0 0
    %185 = vmatprep.subr.bf16.mxu0 0
    %186 = vmatpush1.bf16.msra.mxu0 0
    %187 = vmatprep.mubr.bf16.mxu0 0
    %188 = vmatmul.mubr.bf16.gmra.mrb[0].mxu0 %v105
    %v189 = vpop.f32.mrb[0].mxu0
    %v190 = vadd.f32 0.0, %v189
    %v191 = vpop.f32.mrb[0].mxu0
    %v192 = vpop.f32.mrb[0].mxu0
    %v193 = vadd.f32 0.0, %v192
    %v194 = vpop.f32.mrb[0].mxu0
    %195 = vdwg.mxu0
    %v196 = vpack.c.bf16 %v193, %v190
    %v197 = vld [vmem:[%s4] sm:$0x1]
    %v199 = vpack.i.b16 %v197, %v197
    %v201 = vlaneseq
    %v202 = vshrl.u32 %v201, 7
    %v203 = vsub.s32 0, %v202
    %v204 = vrot.slane %v199, %v203
    %v205 = vadd.bf16 %v196, %v204
    %v206 = vmax.bf16 %v205, 0
    %v207 = vld [vmem:[#allocation7] sm:$0xf]
    %v208 = vld [vmem:[#allocation7 + $0x4] sm:$0xf]
    %v209 = vld [vmem:[#allocation7 + $0x8] sm:$0xf]
    %v210 = vld [vmem:[#allocation7 + $0xc] sm:$0xf]
    %v211 = vld [vmem:[#allocation7 + $0x10] sm:$0xf]
    %v212 = vld [vmem:[#allocation7 + $0x14] sm:$0xf]
    %v213 = vld [vmem:[#allocation7 + $0x18] sm:$0xf]
    %v214 = vld [vmem:[#allocation7 + $0x1c] sm:$0xf]
    %v215 = vld [vmem:[#allocation7 + $0x20] sm:$0xf]
    %v216 = vld [vmem:[#allocation7 + $0x24] sm:$0xf]
    %v217 = vld [vmem:[#allocation7 + $0x28] sm:$0xf]
    %v218 = vld [vmem:[#allocation7 + $0x2c] sm:$0xf]
    %v219 = vld [vmem:[#allocation7 + $0x30] sm:$0xf]
    %v220 = vld [vmem:[#allocation7 + $0x34] sm:$0xf]
    %v221 = vld [vmem:[#allocation7 + $0x38] sm:$0xf]
    %v222 = vld [vmem:[#allocation7 + $0x3c] sm:$0xf]
    %v239 = vunpack.c.l.b16 %v207
    %v240 = vunpack.c.l.b16 %v208
    %v241 = vunpack.c.l.b16 %v209
    %v242 = vunpack.c.l.b16 %v210
    %v243 = vunpack.c.l.b16 %v211
    %v244 = vunpack.c.l.b16 %v212
    %v245 = vunpack.c.l.b16 %v213
    %v246 = vunpack.c.l.b16 %v214
    %v247 = vunpack.c.l.b16 %v215
    %v248 = vunpack.c.l.b16 %v216
    %v249 = vunpack.c.l.b16 %v217
    %v250 = vunpack.c.l.b16 %v218
    %v251 = vunpack.c.l.b16 %v219
    %v252 = vunpack.c.l.b16 %v220
    %v253 = vunpack.c.l.b16 %v221
    %v254 = vunpack.c.l.b16 %v222
    %v255 = vpack.c.b16 %v240, %v239
    %v256 = vpack.c.b16 %v242, %v241
    %v257 = vpack.c.b16 %v244, %v243
    %v258 = vpack.c.b16 %v246, %v245
    %v259 = vpack.c.b16 %v248, %v247
    %v260 = vpack.c.b16 %v250, %v249
    %v261 = vpack.c.b16 %v252, %v251
    %v262 = vpack.c.b16 %v254, %v253
    %271 = vmatprep.subr.bf16.mxu0 0
    %272 = vmatpush1.bf16.msra.mxu0 %v255
    %273 = vmatprep.subr.bf16.mxu0 0
    %274 = vmatpush1.bf16.msra.mxu0 %v256
    %275 = vmatprep.subr.bf16.mxu0 0
    %276 = vmatpush1.bf16.msra.mxu0 %v257
    %277 = vmatprep.subr.bf16.mxu0 0
    %278 = vmatpush1.bf16.msra.mxu0 %v258
    %279 = vmatprep.subr.bf16.mxu0 0
    %280 = vmatpush1.bf16.msra.mxu0 %v259
    %281 = vmatprep.subr.bf16.mxu0 0
    %282 = vmatpush1.bf16.msra.mxu0 %v260
    %283 = vmatprep.subr.bf16.mxu0 0
    %284 = vmatpush1.bf16.msra.mxu0 %v261
    %285 = vmatprep.subr.bf16.mxu0 0
    %286 = vmatpush1.bf16.msra.mxu0 %v262
    %287 = vmatprep.subr.bf16.mxu0 0
    %288 = vmatpush1.bf16.msra.mxu0 0
    %289 = vmatprep.subr.bf16.mxu0 0
    %290 = vmatpush1.bf16.msra.mxu0 0
    %291 = vmatprep.subr.bf16.mxu0 0
    %292 = vmatpush1.bf16.msra.mxu0 0
    %293 = vmatprep.subr.bf16.mxu0 0
    %294 = vmatpush1.bf16.msra.mxu0 0
    %295 = vmatprep.subr.bf16.mxu0 0
    %296 = vmatpush1.bf16.msra.mxu0 0
    %297 = vmatprep.subr.bf16.mxu0 0
    %298 = vmatpush1.bf16.msra.mxu0 0
    %299 = vmatprep.subr.bf16.mxu0 0
    %300 = vmatpush1.bf16.msra.mxu0 0
    %301 = vmatprep.subr.bf16.mxu0 0
    %302 = vmatpush1.bf16.msra.mxu0 0
    %303 = vmatprep.mubr.bf16.mxu0 0
    %304 = vmatmul.mubr.bf16.gmra.mrb[0].mxu0 %v206
    %v305 = vpop.f32.mrb[0].mxu0
    %v306 = vadd.f32 0.0, %v305
    %v307 = vpop.f32.mrb[0].mxu0
    %v308 = vpop.f32.mrb[0].mxu0
    %v309 = vadd.f32 0.0, %v308
    %v310 = vpop.f32.mrb[0].mxu0
    %311 = vdwg.mxu0
    %v312 = vpack.c.bf16 %v309, %v306
    %v313 = vld [vmem:[%s5] sm:$0x1]
    %v315 = vpack.i.b16 %v313, %v313
    %v317 = vlaneseq
    %v318 = vshrl.u32 %v317, 7
    %v319 = vsub.s32 0, %v318
    %v320 = vrot.slane %v315, %v319
    %v321 = vadd.bf16 %v312, %v320
    %v322 = vmax.bf16 %v321, 0
    %v323 = vld [vmem:[#allocation8] sm:$0xf]
    %v324 = vld [vmem:[#allocation8 + $0x4] sm:$0xf]
    %v325 = vld [vmem:[#allocation8 + $0x8] sm:$0xf]
    %v326 = vld [vmem:[#allocation8 + $0xc] sm:$0xf]
    %v327 = vld [vmem:[#allocation8 + $0x10] sm:$0xf]
    %v328 = vld [vmem:[#allocation8 + $0x14] sm:$0xf]
    %v329 = vld [vmem:[#allocation8 + $0x18] sm:$0xf]
    %v330 = vld [vmem:[#allocation8 + $0x1c] sm:$0xf]
    %v331 = vld [vmem:[#allocation8 + $0x20] sm:$0xf]
    %v332 = vld [vmem:[#allocation8 + $0x24] sm:$0xf]
    %v333 = vld [vmem:[#allocation8 + $0x28] sm:$0xf]
    %v334 = vld [vmem:[#allocation8 + $0x2c] sm:$0xf]
    %v335 = vld [vmem:[#allocation8 + $0x30] sm:$0xf]
    %v336 = vld [vmem:[#allocation8 + $0x34] sm:$0xf]
    %v337 = vld [vmem:[#allocation8 + $0x38] sm:$0xf]
    %v338 = vld [vmem:[#allocation8 + $0x3c] sm:$0xf]
    %v355 = vunpack.c.l.b16 %v323
    %v356 = vunpack.c.l.b16 %v324
    %v357 = vunpack.c.l.b16 %v325
    %v358 = vunpack.c.l.b16 %v326
    %v359 = vunpack.c.l.b16 %v327
    %v360 = vunpack.c.l.b16 %v328
    %v361 = vunpack.c.l.b16 %v329
    %v362 = vunpack.c.l.b16 %v330
    %v363 = vunpack.c.l.b16 %v331
    %v364 = vunpack.c.l.b16 %v332
    %v365 = vunpack.c.l.b16 %v333
    %v366 = vunpack.c.l.b16 %v334
    %v367 = vunpack.c.l.b16 %v335
    %v368 = vunpack.c.l.b16 %v336
    %v369 = vunpack.c.l.b16 %v337
    %v370 = vunpack.c.l.b16 %v338
    %v371 = vpack.c.b16 %v356, %v355
    %v372 = vpack.c.b16 %v358, %v357
    %v373 = vpack.c.b16 %v360, %v359
    %v374 = vpack.c.b16 %v362, %v361
    %v375 = vpack.c.b16 %v364, %v363
    %v376 = vpack.c.b16 %v366, %v365
    %v377 = vpack.c.b16 %v368, %v367
    %v378 = vpack.c.b16 %v370, %v369
    %387 = vmatprep.subr.bf16.mxu0 0
    %388 = vmatpush1.bf16.msra.mxu0 %v371
    %389 = vmatprep.subr.bf16.mxu0 0
    %390 = vmatpush1.bf16.msra.mxu0 %v372
    %391 = vmatprep.subr.bf16.mxu0 0
    %392 = vmatpush1.bf16.msra.mxu0 %v373
    %393 = vmatprep.subr.bf16.mxu0 0
    %394 = vmatpush1.bf16.msra.mxu0 %v374
    %395 = vmatprep.subr.bf16.mxu0 0
    %396 = vmatpush1.bf16.msra.mxu0 %v375
    %397 = vmatprep.subr.bf16.mxu0 0
    %398 = vmatpush1.bf16.msra.mxu0 %v376
    %399 = vmatprep.subr.bf16.mxu0 0
    %400 = vmatpush1.bf16.msra.mxu0 %v377
    %401 = vmatprep.subr.bf16.mxu0 0
    %402 = vmatpush1.bf16.msra.mxu0 %v378
    %403 = vmatprep.subr.bf16.mxu0 0
    %404 = vmatpush1.bf16.msra.mxu0 0
    %405 = vmatprep.subr.bf16.mxu0 0
    %406 = vmatpush1.bf16.msra.mxu0 0
    %407 = vmatprep.subr.bf16.mxu0 0
    %408 = vmatpush1.bf16.msra.mxu0 0
    %409 = vmatprep.subr.bf16.mxu0 0
    %410 = vmatpush1.bf16.msra.mxu0 0
    %411 = vmatprep.subr.bf16.mxu0 0
    %412 = vmatpush1.bf16.msra.mxu0 0
    %413 = vmatprep.subr.bf16.mxu0 0
    %414 = vmatpush1.bf16.msra.mxu0 0
    %415 = vmatprep.subr.bf16.mxu0 0
    %416 = vmatpush1.bf16.msra.mxu0 0
    %417 = vmatprep.subr.bf16.mxu0 0
    %418 = vmatpush1.bf16.msra.mxu0 0
    %419 = vmatprep.mubr.bf16.mxu0 0
    %420 = vmatmul.mubr.bf16.gmra.mrb[0].mxu0 %v322
    %v421 = vpop.f32.mrb[0].mxu0
    %v422 = vadd.f32 0.0, %v421
    %v423 = vpop.f32.mrb[0].mxu0
    %v424 = vpop.f32.mrb[0].mxu0
    %v425 = vadd.f32 0.0, %v424
    %v426 = vpop.f32.mrb[0].mxu0
    %427 = vdwg.mxu0
    %v428 = vpack.c.bf16 %v425, %v422
    %v429 = vld [vmem:[%s6] sm:$0x1]
    %v431 = vpack.i.b16 %v429, %v429
    %v433 = vlaneseq
    %v434 = vshrl.u32 %v433, 7
    %v435 = vsub.s32 0, %v434
    %v436 = vrot.slane %v431, %v435
    %v437 = vadd.bf16 %v428, %v436
    %v438 = vmax.bf16 %v437, 0
    %v440 = vunpack.c.l.b16 %v438
    %v441 = vunpack.c.h.b16 %v438
    %v442 = vpack.c.b16 %v440, %v440
    %v443 = vpack.c.b16 %v441, %v441
    %446 = vst [vmem:[#allocation10] sm:$0xf] %v442
    %447 = vst [vmem:[#allocation10 + $0x4] sm:$0xf] %v443
    // Predicated region
    $region46: #{tpu_custom_call.1} parent=1 // pred_check
      _
    $region47: #{tpu_custom_call.1} parent=1 // pred_check_branch
      %449 = sbr.rel (0) target = $region49
    $region48: #{tpu_custom_call.1} parent=1 // pred_region
      %s451 = ssub.s32 128, 128
      %452 = vsyncadd [#allocation4], %s451
      %s453 = sshll.u32 [#allocation10], 4
      %s454 = int_to_ptr.vmem [resolvable:$true] %s453
      %459 = dma.vmem_to_hbm [thread:$0]  %s454, 128, %s7, [#allocation4], 64, 64, 4
    $region49: #{tpu_custom_call.1} parent=1 // pred_fallthru
      _
    // Predicated region
    $region50: #{tpu_custom_call.1} parent=1 // pred_check
      _
    $region51: #{tpu_custom_call.1} parent=1 // pred_check_branch
      %461 = sbr.rel (0) target = $region53
    $region52: #{tpu_custom_call.1} parent=1 // pred_region
      %462 = dma.done [#allocation4], 128
    $region53: #{tpu_custom_call.1} parent=1 // pred_fallthru
      _
    %463 = vsyncpa [#allocation3], 1
    %464 = vsyncpa [#allocation6], 1
    %465 = vsyncpa [#allocation9], 1
    %466 = vsyncpa [#allocation4], 1

// kernel: tpu_custom_call.1
$region0: #{tpu_custom_call.1}
  #allocation0 [shape = 'u32[]', space=smem, size = 0x4, offset = 0x4, fixed_abs, tag = 'smem constant byte address 0x4 - core index']
  #allocation1 [shape = 'u32[144,128]{1,0:T(1,128)}', space=vmem, size = 0x12000, scoped, tag = 'internal scratch']
  %s0 = inlined_call_operand.hbm [shape: bf16[16,128], index: 0, kind: input, shape index: {}]
  %s1 = inlined_call_operand.hbm [shape: bf16[128,128], index: 1, kind: input, shape index: {}]
  %s2 = inlined_call_operand.hbm [shape: bf16[128,128], index: 2, kind: input, shape index: {}]
  %s3 = inlined_call_operand.hbm [shape: bf16[128,128], index: 3, kind: input, shape index: {}]
  %s4 = inlined_call_operand.vmem [shape: bf16[1,128], index: 4, kind: input, shape index: {}]
  %s5 = inlined_call_operand.vmem [shape: bf16[1,128], index: 5, kind: input, shape index: {}]
  %s6 = inlined_call_operand.vmem [shape: bf16[1,128], index: 6, kind: input, shape index: {}]
  %s7 = inlined_call_operand.hbm [shape: bf16[16,128], index: 7, kind: output, shape index: {}]
  %s8 = sld [smem:[#allocation0]]
  $region54: #{tpu_custom_call.1} parent=0
    _
  %s10 = ssub.s32 1, %s8
  %s11 = scalar_select 0, %s10, %s8
  $region1: #{tpu_custom_call.1} parent=0
    #allocation2 [shape = 'u8[4096]{0}', space=vmem, size = 0x1000, scoped, tag = 'input window, operand 0, single buffered']
    #allocation3 [shape = 's32[1]{0}', space=sflag, size = 0x4, scoped, tag = 'scoped memory for tpu_custom_call.1']
    #allocation4 [shape = 's32[1]{0}', space=sflag, size = 0x4, scoped, tag = 'scoped memory for tpu_custom_call.1']
    #allocation5 [shape = 'u8[32768]{0}', space=vmem, size = 0x8000, scoped, tag = 'input window, operand 1, single buffered']
    #allocation6 [shape = 's32[1]{0}', space=sflag, size = 0x4, scoped, tag = 'scoped memory for tpu_custom_call.1']
    #allocation7 [shape = 'u8[32768]{0}', space=vmem, size = 0x8000, scoped, tag = 'input window, operand 2, single buffered']
    #allocation8 [shape = 'u8[32768]{0}', space=vmem, size = 0x8000, scoped, tag = 'input window, operand 3, single buffered']
    #allocation9 [shape = 's32[1]{0}', space=sflag, size = 0x4, scoped, tag = 'scoped memory for tpu_custom_call.1']
    #allocation10 [shape = 'u8[4096]{0}', space=vmem, size = 0x1000, scoped, tag = 'output window, operand 0, single buffered']
    %12 = vsyncpa [#allocation3], 0
    %13 = vsyncpa [#allocation6], 0
    %14 = vsyncpa [#allocation9], 0
    %15 = vsyncpa [#allocation4], 0
    // Predicated region
    $region2: #{tpu_custom_call.1} parent=1 // pred_check
      _
    $region3: #{tpu_custom_call.1} parent=1 // pred_check_branch
      %17 = sbr.rel (0) target = $region5
    $region4: #{tpu_custom_call.1} parent=1 // pred_region
      %s19 = ssub.s32 128, 128
      %20 = vsyncadd [#allocation3], %s19
      %s21 = sshll.u32 [#allocation2], 4
      %s22 = int_to_ptr.vmem [resolvable:$true] %s21
      %27 = dma.hbm_to_vmem [thread:$0]  %s0, 128, %s22, [#allocation3], 64, 64, 4
    $region5: #{tpu_custom_call.1} parent=1 // pred_fallthru
      _
    // Predicated region
    $region6: #{tpu_custom_call.1} parent=1 // pred_check
      _
    $region7: #{tpu_custom_call.1} parent=1 // pred_check_branch
      %29 = sbr.rel (0) target = $region9
    $region8: #{tpu_custom_call.1} parent=1 // pred_region
      %s31 = ssub.s32 1024, 1024
      %32 = vsyncadd [#allocation6], %s31
      %s33 = sshll.u32 [#allocation5], 4
      %s34 = int_to_ptr.vmem [resolvable:$true] %s33
      %39 = dma.hbm_to_vmem [thread:$0]  %s1, 1024, %s34, [#allocation6], 64, 64, 4
    $region9: #{tpu_custom_call.1} parent=1 // pred_fallthru
      _
    // Predicated region
    $region10: #{tpu_custom_call.1} parent=1 // pred_check
      _
    $region11: #{tpu_custom_call.1} parent=1 // pred_check_branch
      %41 = sbr.rel (0) target = $region13
    $region12: #{tpu_custom_call.1} parent=1 // pred_region
      %s43 = ssub.s32 1024, 1024
      %44 = vsyncadd [#allocation6], %s43
      %s45 = sshll.u32 [#allocation7], 4
      %s46 = int_to_ptr.vmem [resolvable:$true] %s45
      %51 = dma.hbm_to_vmem [thread:$0]  %s2, 1024, %s46, [#allocation6], 64, 64, 4
    $region13: #{tpu_custom_call.1} parent=1 // pred_fallthru
      _
    // Predicated region
    $region14: #{tpu_custom_call.1} parent=1 // pred_check
      _
    $region15: #{tpu_custom_call.1} parent=1 // pred_check_branch
      %53 = sbr.rel (0) target = $region17
    $region16: #{tpu_custom_call.1} parent=1 // pred_region
      %s55 = ssub.s32 1024, 1024
      %56 = vsyncadd [#allocation9], %s55
      %s57 = sshll.u32 [#allocation8], 4
      %s58 = int_to_ptr.vmem [resolvable:$true] %s57
      %63 = dma.hbm_to_vmem [thread:$0]  %s3, 1024, %s58, [#allocation9], 64, 64, 4
    $region17: #{tpu_custom_call.1} parent=1 // pred_fallthru
      _
    // Predicated region
    $region18: #{tpu_custom_call.1} parent=1 // pred_check
      _
    $region19: #{tpu_custom_call.1} parent=1 // pred_check_branch
      %65 = sbr.rel (0) target = $region21
    $region20: #{tpu_custom_call.1} parent=1 // pred_region
      _
    $region21: #{tpu_custom_call.1} parent=1 // pred_fallthru
      _
    // Predicated region
    $region22: #{tpu_custom_call.1} parent=1 // pred_check
      _
    $region23: #{tpu_custom_call.1} parent=1 // pred_check_branch
      %67 = sbr.rel (0) target = $region25
    $region24: #{tpu_custom_call.1} parent=1 // pred_region
      _
    $region25: #{tpu_custom_call.1} parent=1 // pred_fallthru
      _
    // Predicated region
    $region26: #{tpu_custom_call.1} parent=1 // pred_check
      _
    $region27: #{tpu_custom_call.1} parent=1 // pred_check_branch
      %69 = sbr.rel (0) target = $region29
    $region28: #{tpu_custom_call.1} parent=1 // pred_region
      _
    $region29: #{tpu_custom_call.1} parent=1 // pred_fallthru
      _
    // Predicated region
    $region30: #{tpu_custom_call.1} parent=1 // pred_check
      _
    $region31: #{tpu_custom_call.1} parent=1 // pred_check_branch
      %71 = sbr.rel (0) target = $region33
    $region32: #{tpu_custom_call.1} parent=1 // pred_region
      %72 = dma.done [#allocation3], 128
    $region33: #{tpu_custom_call.1} parent=1 // pred_fallthru
      _
    // Predicated region
    $region34: #{tpu_custom_call.1} parent=1 // pred_check
      _
    $region35: #{tpu_custom_call.1} parent=1 // pred_check_branch
      %74 = sbr.rel (0) target = $region37
    $region36: #{tpu_custom_call.1} parent=1 // pred_region
      %75 = dma.done [#allocation6], 1024
    $region37: #{tpu_custom_call.1} parent=1 // pred_fallthru
      _
    // Predicated region
    $region38: #{tpu_custom_call.1} parent=1 // pred_check
      _
    $region39: #{tpu_custom_call.1} parent=1 // pred_check_branch
      %77 = sbr.rel (0) target = $region41
    $region40: #{tpu_custom_call.1} parent=1 // pred_region
      %78 = dma.done [#allocation6], 1024
    $region41: #{tpu_custom_call.1} parent=1 // pred_fallthru
      _
    // Predicated region
    $region42: #{tpu_custom_call.1} parent=1 // pred_check
      _
    $region43: #{tpu_custom_call.1} parent=1 // pred_check_branch
      %80 = sbr.rel (0) target = $region45
    $region44: #{tpu_custom_call.1} parent=1 // pred_region
      %81 = dma.done [#allocation9], 1024
    $region45: #{tpu_custom_call.1} parent=1 // pred_fallthru
      _
    %v83 = vld [vmem:[#allocation2] sm:$0xf]
    %v84 = vld [vmem:[#allocation2 + $0x4] sm:$0xf]
    %v85 = vld [vmem:[#allocation5] sm:$0xf]
    %v86 = vld [vmem:[#allocation5 + $0x4] sm:$0xf]
    %v87 = vld [vmem:[#allocation5 + $0x8] sm:$0xf]
    %v88 = vld [vmem:[#allocation5 + $0xc] sm:$0xf]
    %v89 = vld [vmem:[#allocation5 + $0x10] sm:$0xf]
    %v90 = vld [vmem:[#allocation5 + $0x14] sm:$0xf]
    %v91 = vld [vmem:[#allocation5 + $0x18] sm:$0xf]
    %v92 = vld [vmem:[#allocation5 + $0x1c] sm:$0xf]
    %v93 = vld [vmem:[#allocation5 + $0x20] sm:$0xf]
    %v94 = vld [vmem:[#allocation5 + $0x24] sm:$0xf]
    %v95 = vld [vmem:[#allocation5 + $0x28] sm:$0xf]
    %v96 = vld [vmem:[#allocation5 + $0x2c] sm:$0xf]
    %v97 = vld [vmem:[#allocation5 + $0x30] sm:$0xf]
    %v98 = vld [vmem:[#allocation5 + $0x34] sm:$0xf]
    %v99 = vld [vmem:[#allocation5 + $0x38] sm:$0xf]
    %v100 = vld [vmem:[#allocation5 + $0x3c] sm:$0xf]
    %v103 = vunpack.c.l.b16 %v83
    %v104 = vunpack.c.l.b16 %v84
    %v105 = vpack.c.b16 %v104, %v103
    %v123 = vunpack.c.l.b16 %v85
    %v124 = vunpack.c.l.b16 %v86
    %v125 = vunpack.c.l.b16 %v87
    %v126 = vunpack.c.l.b16 %v88
    %v127 = vunpack.c.l.b16 %v89
    %v128 = vunpack.c.l.b16 %v90
    %v129 = vunpack.c.l.b16 %v91
    %v130 = vunpack.c.l.b16 %v92
    %v131 = vunpack.c.l.b16 %v93
    %v132 = vunpack.c.l.b16 %v94
    %v133 = vunpack.c.l.b16 %v95
    %v134 = vunpack.c.l.b16 %v96
    %v135 = vunpack.c.l.b16 %v97
    %v136 = vunpack.c.l.b16 %v98
    %v137 = vunpack.c.l.b16 %v99
    %v138 = vunpack.c.l.b16 %v100
    %v139 = vpack.c.b16 %v124, %v123
    %v140 = vpack.c.b16 %v126, %v125
    %v141 = vpack.c.b16 %v128, %v127
    %v142 = vpack.c.b16 %v130, %v129
    %v143 = vpack.c.b16 %v132, %v131
    %v144 = vpack.c.b16 %v134, %v133
    %v145 = vpack.c.b16 %v136, %v135
    %v146 = vpack.c.b16 %v138, %v137
    %155 = vmatprep.subr.bf16.mxu0 0
    %156 = vmatpush1.bf16.msra.mxu0 %v139
    %157 = vmatprep.subr.bf16.mxu0 0
    %158 = vmatpush1.bf16.msra.mxu0 %v140
    %159 = vmatprep.subr.bf16.mxu0 0
    %160 = vmatpush1.bf16.msra.mxu0 %v141
    %161 = vmatprep.subr.bf16.mxu0 0
    %162 = vmatpush1.bf16.msra.mxu0 %v142
    %163 = vmatprep.subr.bf16.mxu0 0
    %164 = vmatpush1.bf16.msra.mxu0 %v143
    %165 = vmatprep.subr.bf16.mxu0 0
    %166 = vmatpush1.bf16.msra.mxu0 %v144
    %167 = vmatprep.subr.bf16.mxu0 0
    %168 = vmatpush1.bf16.msra.mxu0 %v145
    %169 = vmatprep.subr.bf16.mxu0 0
    %170 = vmatpush1.bf16.msra.mxu0 %v146
    %171 = vmatprep.subr.bf16.mxu0 0
    %172 = vmatpush1.bf16.msra.mxu0 0
    %173 = vmatprep.subr.bf16.mxu0 0
    %174 = vmatpush1.bf16.msra.mxu0 0
    %175 = vmatprep.subr.bf16.mxu0 0
    %176 = vmatpush1.bf16.msra.mxu0 0
    %177 = vmatprep.subr.bf16.mxu0 0
    %178 = vmatpush1.bf16.msra.mxu0 0
    %179 = vmatprep.subr.bf16.mxu0 0
    %180 = vmatpush1.bf16.msra.mxu0 0
    %181 = vmatprep.subr.bf16.mxu0 0
    %182 = vmatpush1.bf16.msra.mxu0 0
    %183 = vmatprep.subr.bf16.mxu0 0
    %184 = vmatpush1.bf16.msra.mxu0 0
    %185 = vmatprep.subr.bf16.mxu0 0
    %186 = vmatpush1.bf16.msra.mxu0 0
    %187 = vmatprep.mubr.bf16.mxu0 0
    %188 = vmatmul.mubr.bf16.gmra.mrb[0].mxu0 %v105
    %v189 = vpop.f32.mrb[0].mxu0
    %v190 = vadd.f32 0.0, %v189
    %v191 = vpop.f32.mrb[0].mxu0
    %v192 = vpop.f32.mrb[0].mxu0
    %v193 = vadd.f32 0.0, %v192
    %v194 = vpop.f32.mrb[0].mxu0
    %195 = vdwg.mxu0
    %v196 = vpack.c.bf16 %v193, %v190
    %v197 = vld [vmem:[%s4] sm:$0x1]
    %v199 = vpack.i.b16 %v197, %v197
    %v201 = vlaneseq
    %v202 = vshrl.u32 %v201, 7
    %v203 = vsub.s32 0, %v202
    %v204 = vrot.slane %v199, %v203
    %v205 = vadd.bf16 %v196, %v204
    %v206 = vmax.bf16 %v205, 0
    %v207 = vld [vmem:[#allocation7] sm:$0xf]
    %v208 = vld [vmem:[#allocation7 + $0x4] sm:$0xf]
    %v209 = vld [vmem:[#allocation7 + $0x8] sm:$0xf]
    %v210 = vld [vmem:[#allocation7 + $0xc] sm:$0xf]
    %v211 = vld [vmem:[#allocation7 + $0x10] sm:$0xf]
    %v212 = vld [vmem:[#allocation7 + $0x14] sm:$0xf]
    %v213 = vld [vmem:[#allocation7 + $0x18] sm:$0xf]
    %v214 = vld [vmem:[#allocation7 + $0x1c] sm:$0xf]
    %v215 = vld [vmem:[#allocation7 + $0x20] sm:$0xf]
    %v216 = vld [vmem:[#allocation7 + $0x24] sm:$0xf]
    %v217 = vld [vmem:[#allocation7 + $0x28] sm:$0xf]
    %v218 = vld [vmem:[#allocation7 + $0x2c] sm:$0xf]
    %v219 = vld [vmem:[#allocation7 + $0x30] sm:$0xf]
    %v220 = vld [vmem:[#allocation7 + $0x34] sm:$0xf]
    %v221 = vld [vmem:[#allocation7 + $0x38] sm:$0xf]
    %v222 = vld [vmem:[#allocation7 + $0x3c] sm:$0xf]
    %v239 = vunpack.c.l.b16 %v207
    %v240 = vunpack.c.l.b16 %v208
    %v241 = vunpack.c.l.b16 %v209
    %v242 = vunpack.c.l.b16 %v210
    %v243 = vunpack.c.l.b16 %v211
    %v244 = vunpack.c.l.b16 %v212
    %v245 = vunpack.c.l.b16 %v213
    %v246 = vunpack.c.l.b16 %v214
    %v247 = vunpack.c.l.b16 %v215
    %v248 = vunpack.c.l.b16 %v216
    %v249 = vunpack.c.l.b16 %v217
    %v250 = vunpack.c.l.b16 %v218
    %v251 = vunpack.c.l.b16 %v219
    %v252 = vunpack.c.l.b16 %v220
    %v253 = vunpack.c.l.b16 %v221
    %v254 = vunpack.c.l.b16 %v222
    %v255 = vpack.c.b16 %v240, %v239
    %v256 = vpack.c.b16 %v242, %v241
    %v257 = vpack.c.b16 %v244, %v243
    %v258 = vpack.c.b16 %v246, %v245
    %v259 = vpack.c.b16 %v248, %v247
    %v260 = vpack.c.b16 %v250, %v249
    %v261 = vpack.c.b16 %v252, %v251
    %v262 = vpack.c.b16 %v254, %v253
    %271 = vmatprep.subr.bf16.mxu0 0
    %272 = vmatpush1.bf16.msra.mxu0 %v255
    %273 = vmatprep.subr.bf16.mxu0 0
    %274 = vmatpush1.bf16.msra.mxu0 %v256
    %275 = vmatprep.subr.bf16.mxu0 0
    %276 = vmatpush1.bf16.msra.mxu0 %v257
    %277 = vmatprep.subr.bf16.mxu0 0
    %278 = vmatpush1.bf16.msra.mxu0 %v258
    %279 = vmatprep.subr.bf16.mxu0 0
    %280 = vmatpush1.bf16.msra.mxu0 %v259
    %281 = vmatprep.subr.bf16.mxu0 0
    %282 = vmatpush1.bf16.msra.mxu0 %v260
    %283 = vmatprep.subr.bf16.mxu0 0
    %284 = vmatpush1.bf16.msra.mxu0 %v261
    %285 = vmatprep.subr.bf16.mxu0 0
    %286 = vmatpush1.bf16.msra.mxu0 %v262
    %287 = vmatprep.subr.bf16.mxu0 0
    %288 = vmatpush1.bf16.msra.mxu0 0
    %289 = vmatprep.subr.bf16.mxu0 0
    %290 = vmatpush1.bf16.msra.mxu0 0
    %291 = vmatprep.subr.bf16.mxu0 0
    %292 = vmatpush1.bf16.msra.mxu0 0
    %293 = vmatprep.subr.bf16.mxu0 0
    %294 = vmatpush1.bf16.msra.mxu0 0
    %295 = vmatprep.subr.bf16.mxu0 0
    %296 = vmatpush1.bf16.msra.mxu0 0
    %297 = vmatprep.subr.bf16.mxu0 0
    %298 = vmatpush1.bf16.msra.mxu0 0
    %299 = vmatprep.subr.bf16.mxu0 0
    %300 = vmatpush1.bf16.msra.mxu0 0
    %301 = vmatprep.subr.bf16.mxu0 0
    %302 = vmatpush1.bf16.msra.mxu0 0
    %303 = vmatprep.mubr.bf16.mxu0 0
    %304 = vmatmul.mubr.bf16.gmra.mrb[0].mxu0 %v206
    %v305 = vpop.f32.mrb[0].mxu0
    %v306 = vadd.f32 0.0, %v305
    %v307 = vpop.f32.mrb[0].mxu0
    %v308 = vpop.f32.mrb[0].mxu0
    %v309 = vadd.f32 0.0, %v308
    %v310 = vpop.f32.mrb[0].mxu0
    %311 = vdwg.mxu0
    %v312 = vpack.c.bf16 %v309, %v306
    %v313 = vld [vmem:[%s5] sm:$0x1]
    %v315 = vpack.i.b16 %v313, %v313
    %v317 = vlaneseq
    %v318 = vshrl.u32 %v317, 7
    %v319 = vsub.s32 0, %v318
    %v320 = vrot.slane %v315, %v319
    %v321 = vadd.bf16 %v312, %v320
    %v322 = vmax.bf16 %v321, 0
    %v323 = vld [vmem:[#allocation8] sm:$0xf]
    %v324 = vld [vmem:[#allocation8 + $0x4] sm:$0xf]
    %v325 = vld [vmem:[#allocation8 + $0x8] sm:$0xf]
    %v326 = vld [vmem:[#allocation8 + $0xc] sm:$0xf]
    %v327 = vld [vmem:[#allocation8 + $0x10] sm:$0xf]
    %v328 = vld [vmem:[#allocation8 + $0x14] sm:$0xf]
    %v329 = vld [vmem:[#allocation8 + $0x18] sm:$0xf]
    %v330 = vld [vmem:[#allocation8 + $0x1c] sm:$0xf]
    %v331 = vld [vmem:[#allocation8 + $0x20] sm:$0xf]
    %v332 = vld [vmem:[#allocation8 + $0x24] sm:$0xf]
    %v333 = vld [vmem:[#allocation8 + $0x28] sm:$0xf]
    %v334 = vld [vmem:[#allocation8 + $0x2c] sm:$0xf]
    %v335 = vld [vmem:[#allocation8 + $0x30] sm:$0xf]
    %v336 = vld [vmem:[#allocation8 + $0x34] sm:$0xf]
    %v337 = vld [vmem:[#allocation8 + $0x38] sm:$0xf]
    %v338 = vld [vmem:[#allocation8 + $0x3c] sm:$0xf]
    %v355 = vunpack.c.l.b16 %v323
    %v356 = vunpack.c.l.b16 %v324
    %v357 = vunpack.c.l.b16 %v325
    %v358 = vunpack.c.l.b16 %v326
    %v359 = vunpack.c.l.b16 %v327
    %v360 = vunpack.c.l.b16 %v328
    %v361 = vunpack.c.l.b16 %v329
    %v362 = vunpack.c.l.b16 %v330
    %v363 = vunpack.c.l.b16 %v331
    %v364 = vunpack.c.l.b16 %v332
    %v365 = vunpack.c.l.b16 %v333
    %v366 = vunpack.c.l.b16 %v334
    %v367 = vunpack.c.l.b16 %v335
    %v368 = vunpack.c.l.b16 %v336
    %v369 = vunpack.c.l.b16 %v337
    %v370 = vunpack.c.l.b16 %v338
    %v371 = vpack.c.b16 %v356, %v355
    %v372 = vpack.c.b16 %v358, %v357
    %v373 = vpack.c.b16 %v360, %v359
    %v374 = vpack.c.b16 %v362, %v361
    %v375 = vpack.c.b16 %v364, %v363
    %v376 = vpack.c.b16 %v366, %v365
    %v377 = vpack.c.b16 %v368, %v367
    %v378 = vpack.c.b16 %v370, %v369
    %387 = vmatprep.subr.bf16.mxu0 0
    %388 = vmatpush1.bf16.msra.mxu0 %v371
    %389 = vmatprep.subr.bf16.mxu0 0
    %390 = vmatpush1.bf16.msra.mxu0 %v372
    %391 = vmatprep.subr.bf16.mxu0 0
    %392 = vmatpush1.bf16.msra.mxu0 %v373
    %393 = vmatprep.subr.bf16.mxu0 0
    %394 = vmatpush1.bf16.msra.mxu0 %v374
    %395 = vmatprep.subr.bf16.mxu0 0
    %396 = vmatpush1.bf16.msra.mxu0 %v375
    %397 = vmatprep.subr.bf16.mxu0 0
    %398 = vmatpush1.bf16.msra.mxu0 %v376
    %399 = vmatprep.subr.bf16.mxu0 0
    %400 = vmatpush1.bf16.msra.mxu0 %v377
    %401 = vmatprep.subr.bf16.mxu0 0
    %402 = vmatpush1.bf16.msra.mxu0 %v378
    %403 = vmatprep.subr.bf16.mxu0 0
    %404 = vmatpush1.bf16.msra.mxu0 0
    %405 = vmatprep.subr.bf16.mxu0 0
    %406 = vmatpush1.bf16.msra.mxu0 0
    %407 = vmatprep.subr.bf16.mxu0 0
    %408 = vmatpush1.bf16.msra.mxu0 0
    %409 = vmatprep.subr.bf16.mxu0 0
    %410 = vmatpush1.bf16.msra.mxu0 0
    %411 = vmatprep.subr.bf16.mxu0 0
    %412 = vmatpush1.bf16.msra.mxu0 0
    %413 = vmatprep.subr.bf16.mxu0 0
    %414 = vmatpush1.bf16.msra.mxu0 0
    %415 = vmatprep.subr.bf16.mxu0 0
    %416 = vmatpush1.bf16.msra.mxu0 0
    %417 = vmatprep.subr.bf16.mxu0 0
    %418 = vmatpush1.bf16.msra.mxu0 0
    %419 = vmatprep.mubr.bf16.mxu0 0
    %420 = vmatmul.mubr.bf16.gmra.mrb[0].mxu0 %v322
    %v421 = vpop.f32.mrb[0].mxu0
    %v422 = vadd.f32 0.0, %v421
    %v423 = vpop.f32.mrb[0].mxu0
    %v424 = vpop.f32.mrb[0].mxu0
    %v425 = vadd.f32 0.0, %v424
    %v426 = vpop.f32.mrb[0].mxu0
    %427 = vdwg.mxu0
    %v428 = vpack.c.bf16 %v425, %v422
    %v429 = vld [vmem:[%s6] sm:$0x1]
    %v431 = vpack.i.b16 %v429, %v429
    %v433 = vlaneseq
    %v434 = vshrl.u32 %v433, 7
    %v435 = vsub.s32 0, %v434
    %v436 = vrot.slane %v431, %v435
    %v437 = vadd.bf16 %v428, %v436
    %v438 = vmax.bf16 %v437, 0
    %v440 = vunpack.c.l.b16 %v438
    %v441 = vunpack.c.h.b16 %v438
    %v442 = vpack.c.b16 %v440, %v440
    %v443 = vpack.c.b16 %v441, %v441
    %446 = vst [vmem:[#allocation10] sm:$0xf] %v442
    %447 = vst [vmem:[#allocation10 + $0x4] sm:$0xf] %v443
    // Predicated region
    $region46: #{tpu_custom_call.1} parent=1 // pred_check
      _
    $region47: #{tpu_custom_call.1} parent=1 // pred_check_branch
      %449 = sbr.rel (0) target = $region49
    $region48: #{tpu_custom_call.1} parent=1 // pred_region
      %s451 = ssub.s32 128, 128
      %452 = vsyncadd [#allocation4], %s451
      %s453 = sshll.u32 [#allocation10], 4
      %s454 = int_to_ptr.vmem [resolvable:$true] %s453
      %459 = dma.vmem_to_hbm [thread:$0]  %s454, 128, %s7, [#allocation4], 64, 64, 4
    $region49: #{tpu_custom_call.1} parent=1 // pred_fallthru
      _
    // Predicated region
    $region50: #{tpu_custom_call.1} parent=1 // pred_check
      _
    $region51: #{tpu_custom_call.1} parent=1 // pred_check_branch
      %461 = sbr.rel (0) target = $region53
    $region52: #{tpu_custom_call.1} parent=1 // pred_region
      %462 = dma.done [#allocation4], 128
    $region53: #{tpu_custom_call.1} parent=1 // pred_fallthru
      _
    %463 = vsyncpa [#allocation3], 1
    %464 = vsyncpa [#allocation6], 1
    %465 = vsyncpa [#allocation9], 1
    %466 = vsyncpa [#allocation4], 1

</llo_original>
